<compile_context>
chip_gen: v7x
topology: tpu7x:2x2x1
jax: 0.10.0
libtpu: 0.0.40
codegen_flags: <defaults>
</compile_context>

<pallas_src>
import functools

import numpy as np
import jax
import jax.numpy as jnp
from jax.experimental import pallas as pl
from jax.experimental.pallas import tpu as pltpu

KERNEL_SIZE = 11
SIGMA = 1.5


def _gaussian_weights_1d(kernel_size: int, sigma: float) -> np.ndarray:
    # Matches torchmetrics _gaussian(): arange((1-k)/2, (1+k)/2), exp(-(d/s)^2/2), normalize.
    dist = np.arange((1 - kernel_size) / 2.0, (1 + kernel_size) / 2.0, 1.0, dtype=np.float64)
    g = np.exp(-((dist / sigma) ** 2) / 2.0)
    return (g / g.sum()).astype(np.float32)


def _round_up(v: int, m: int) -> int:
    return ((v + m - 1) // m) * m


def _pick_tb(n: int, h: int, w: int, hout: int, wp: int, itemsize: int, budget_bytes: int) -> int:
    """Largest channel batch TB that divides n, keeps TB*h sublane-aligned and fits VMEM.

    Among the fitting divisors, prefer ones with grid = n // TB >= 2 so the parallel grid
    axis can shard across both TensorCores on v7x (near-zero cost on 1-TC chips)."""
    # Per-channel VMEM footprint (bytes): double-buffered inputs, f32 copies + centered
    # temporaries, bf16 `s`, f32 `t` + bf16 slab copies, 5 stage-2 maps + elementwise temps.
    per_chan = h * w * (4 * itemsize + 24) + h * wp * 32 + hout * wp * 48 + 8192
    gw_bytes = 2 * (w * wp * 2)                       # bf16, double-buffered

    def fits(d):
        ghb_bytes = 2 * ((d * hout) * (d * h) * 2)    # block-diag gh, bf16, double-buffered
        return d <= 16 and d * per_chan + gw_bytes + ghb_bytes <= budget_bytes

    valid = [d for d in range(1, n + 1) if n % d == 0 and ((d * h) % 8 == 0 or d == n)]
    fitting = [d for d in valid if fits(d)]
    if not fitting:
        # TODO(synk): halo-tiled H/W blocks would be needed if even TB=1 exceeds VMEM.
        return min(valid)
    multi = [d for d in fitting if (n // d) >= 2]
    return max(multi) if multi else max(fitting)


def _wmse_ssim_kernel(x_ref, y_ref, gw_ref, ghb_ref, o_ref, *, tb, h, wout, c1, c2):
    # x_ref/y_ref: (tb*h, w) block of the flattened (B*C*H, W) images.
    xf = x_ref[...].astype(jnp.float32)
    yf = y_ref[...].astype(jnp.float32)
    gw = gw_ref[...]                      # (w, wp)           bf16 column-smoothing banded matrix
    ghb = ghb_ref[...]                    # (tb*hout, tb*h)   bf16 block-diag row-smoothing matrix
    wp = gw.shape[1]
    w = xf.shape[1]
    rows = tb * h

    def _sum2d(a):                        # full reduction kept as (1, 1)
        return jnp.sum(jnp.sum(a, axis=1, keepdims=True), axis=0, keepdims=True)

    # ---- MSE partial: sum of squared errors over this block (pure f32) ----
    d = xf - yf
    sse = _sum2d(d * d)                                                         # (1, 1)

    # ---- per-block f32 centering before the bf16 cast (keeps sig_* cancellation sharp) ----
    inv_cnt = 1.0 / float(rows * w)
    cx = _sum2d(xf) * inv_cnt                                                   # (1, 1)
    cy = _sum2d(yf) * inv_cnt
    xc = xf - cx
    yc = yf - cy

    # ---- SSIM: separable gaussian smoothing on the MXU, bf16 operands / f32 accumulate ----
    # Stage 1 (fused over the 5 maps x all tb channels): one matmul along W.
    s = jnp.concatenate([
        xc.astype(jnp.bfloat16),
        yc.astype(jnp.bfloat16),
        (xc * xc).astype(jnp.bfloat16),
        (yc * yc).astype(jnp.bfloat16),
        (xc * yc).astype(jnp.bfloat16),
    ], axis=0)                                                                  # (5*rows, w) bf16
    t = jnp.dot(s, gw, preferred_element_type=jnp.float32)                      # (5*rows, wp) f32

    # Stage 2: one block-diagonal matmul per map smooths all tb channels at once.
    def smooth(g):
        slab = t[g * rows:(g + 1) * rows, :].astype(jnp.bfloat16)               # aligned view + cast
        return jnp.dot(ghb, slab, preferred_element_type=jnp.float32)           # (tb*hout, wp) f32

    mu_xc = smooth(0)
    mu_yc = smooth(1)
    e_xx = smooth(2)
    e_yy = smooth(3)
    e_xy = smooth(4)

    # ---- hoisted elementwise SSIM math, once per grid step, all in f32 ----
    mu_x = mu_xc + cx                      # un-centered means for the luminance term
    mu_y = mu_yc + cy
    mu_xx = mu_x * mu_x
    mu_yy = mu_y * mu_y
    mu_xy = mu_x * mu_y
    # clamp(min=0) as in the original implementation being reproduced (shift-invariant).
    sig_xx = jnp.maximum(e_xx - mu_xc * mu_xc, 0.0)
    sig_yy = jnp.maximum(e_yy - mu_yc * mu_yc, 0.0)
    sig_xy = e_xy - mu_xc * mu_yc

    num = (2.0 * mu_xy + c1) * (2.0 * sig_xy + c2)
    den = (mu_xx + mu_yy + c1) * (sig_xx + sig_yy + c2)                         # >= c1*c2 > 0
    lane = jax.lax.broadcasted_iota(jnp.int32, num.shape, 1)
    smap = jnp.where(lane < wout, num * pl.reciprocal(den, approx=True), 0.0)   # pad lanes -> 0
    ssim_sum = _sum2d(smap)                                                     # (1, 1)

    # ---- lane-dense per-block partial output: [0,0]=SSE, [0,1]=SSIM-sum ----
    row_o = jax.lax.broadcasted_iota(jnp.int32, (8, 128), 0)
    lane_o = jax.lax.broadcasted_iota(jnp.int32, (8, 128), 1)
    zero = jnp.zeros((8, 128), jnp.float32)
    o_ref[...] = (jnp.where((row_o == 0) & (lane_o == 0), sse, zero)
                  + jnp.where((row_o == 0) & (lane_o == 1), ssim_sum, zero))


def w_mse_ssim_loss(pred, target, *, data_range=1.0, w_mse=0.5, w_ssim=0.5):
    """Weighted MSE + (1 - SSIM) loss. pred/target: (B, C, H, W) arrays."""
    if isinstance(pred, dict):           # mirror the torch module's dict handling
        pred = pred["pred"]
    assert pred.shape == target.shape and pred.ndim == 4
    assert data_range > 0
    B, C, H, W = pred.shape
    K = KERNEL_SIZE
    hout, wout = H - (K - 1), W - (K - 1)
    assert hout > 0 and wout > 0, "spatial dims must exceed the 11x11 SSIM kernel"

    N = B * C
    wp = _round_up(wout, 128)            # lane-padded output width of the W-smoothing matmul

    c1 = float((0.01 * data_range) ** 2)
    c2 = float((0.03 * data_range) ** 2)

    # VMEM budget / channel batching (generation-aware: 128 MiB on v5e/v6e, 64 MiB on v7x).
    try:
        vmem_cap = int(pltpu.get_tpu_info().vmem_capacity_bytes)
    except Exception:
        vmem_cap = 64 * 1024 * 1024
    vmem_limit = int(min(vmem_cap * 3 // 4, 112 * 1024 * 1024))
    itemsize = int(jnp.dtype(pred.dtype).itemsize)
    tb = _pick_tb(N, H, W, hout, wp, itemsize, budget_bytes=vmem_limit // 2)
    grid = N // tb

    # Banded gaussian matrices (bf16 MXU operands):  gconv(img) = Gh @ img @ Gw.
    g1d = _gaussian_weights_1d(K, SIGMA)
    gw_np = np.zeros((W, wp), np.float32)
    for b in range(wout):
        gw_np[b:b + K, b] = g1d
    gh_np = np.zeros((hout, H), np.float32)
    for a in range(hout):
        gh_np[a, a:a + K] = g1d
    ghb_np = np.zeros((tb * hout, tb * H), np.float32)      # block-diag over the tb channels
    for c in range(tb):
        ghb_np[c * hout:(c + 1) * hout, c * H:(c + 1) * H] = gh_np
    gw = jnp.asarray(gw_np, dtype=jnp.bfloat16)
    ghb = jnp.asarray(ghb_np, dtype=jnp.bfloat16)

    # Keep the native dtype (no wrapper up-cast); flatten to 2D so blocks are (TB*H, W).
    x2 = pred.reshape(N * H, W)
    y2 = target.reshape(N * H, W)

    kernel = functools.partial(_wmse_ssim_kernel, tb=tb, h=H, wout=wout, c1=c1, c2=c2)

    grid_spec = pltpu.PrefetchScalarGridSpec(
        num_scalar_prefetch=0,
        grid=(grid,),
        in_specs=[
            pl.BlockSpec((tb * H, W), lambda i: (i, 0)),
            pl.BlockSpec((tb * H, W), lambda i: (i, 0)),
            pl.BlockSpec((W, wp), lambda i: (0, 0)),          # stays resident across steps
            pl.BlockSpec((tb * hout, tb * H), lambda i: (0, 0)),
        ],
        out_specs=pl.BlockSpec((8, 128), lambda i: (i, 0)),
    )

    parts = pl.pallas_call(
        kernel,
        out_shape=jax.ShapeDtypeStruct((grid * 8, 128), jnp.float32),
        grid_spec=grid_spec,
        compiler_params=pltpu.CompilerParams(
            dimension_semantics=("parallel",),
            vmem_limit_bytes=vmem_limit,
        ),
    )(x2, y2, gw, ghb)

    # Final cross-block combine in plain JAX (keeps the grid axis parallel on v7x).
    parts = parts.reshape(grid, 8, 128)
    sse_total = jnp.sum(parts[:, 0, 0])
    ssim_total = jnp.sum(parts[:, 0, 1])
    mse = sse_total / float(N * H * W)
    ssim = ssim_total / float(N * hout * wout)
    return w_mse * mse + w_ssim * (1.0 - ssim)


def _reference_loss(pred, target, *, data_range=1.0, w_mse=0.5, w_ssim=0.5):
    """Pure-JAX f32 reference with identical math (shifted-slice conv, no matmuls)."""
    B, C, H, W = pred.shape
    K = KERNEL_SIZE
    hout, wout = H - (K - 1), W - (K - 1)
    g = jnp.asarray(_gaussian_weights_1d(K, SIGMA))
    x = pred.reshape(B * C, H, W).astype(jnp.float32)
    y = target.reshape(B * C, H, W).astype(jnp.float32)

    def gconv(img):
        tmp = sum(g[b] * img[:, :, b:b + wout] for b in range(K))
        return sum(g[a] * tmp[:, a:a + hout, :] for a in range(K))

    mu_x, mu_y = gconv(x), gconv(y)
    sxx = jnp.maximum(gconv(x * x) - mu_x * mu_x, 0.0)
    syy = jnp.maximum(gconv(y * y) - mu_y * mu_y, 0.0)
    sxy = gconv(x * y) - mu_x * mu_y
    c1 = (0.01 * data_range) ** 2
    c2 = (0.03 * data_range) ** 2
    ssim_map = ((2 * mu_x * mu_y + c1) * (2 * sxy + c2)) / (
        (mu_x * mu_x + mu_y * mu_y + c1) * (sxx + syy + c2))
    mse = jnp.mean((x - y) ** 2)
    return w_mse * mse + w_ssim * (1.0 - jnp.mean(ssim_map))


if __name__ == "__main__":
    key = jax.random.PRNGKey(0)
    k1, k2 = jax.random.split(key)
    B, C, H, W = 2, 4, 16, 16
    pred = jax.random.uniform(k1, (B, C, H, W), dtype=jnp.float32)     # data_range = 1.0
    target = jax.random.uniform(k2, (B, C, H, W), dtype=jnp.float32)

    loss = w_mse_ssim_loss(pred, target, data_range=1.0, w_mse=0.5, w_ssim=0.5)
    loss = jax.block_until_ready(loss)

    ref = jax.block_until_ready(_reference_loss(pred, target))
    # bf16 MXU operands + approx reciprocal: allow bf16-level tolerance vs the f32 reference.
    np.testing.assert_allclose(np.asarray(loss), np.asarray(ref), rtol=2e-3, atol=1e-5)

    print("KERNEL_OK")
</pallas_src>

<mosaic_0001>
module attributes {stable_mosaic.version = 11 : i64} {
  func.func @_wmse_ssim_kernel(%arg0: i32, %arg1: memref<64x16xf32, #tpu.memory_space<vmem>>, %arg2: memref<64x16xf32, #tpu.memory_space<vmem>>, %arg3: memref<16x128xbf16, #tpu.memory_space<vmem>>, %arg4: memref<24x64xbf16, #tpu.memory_space<vmem>>, %arg5: memref<8x128xf32, #tpu.memory_space<vmem>>) attributes {dimension_semantics = [#tpu.dimension_semantics<parallel>], iteration_bounds = array<i64: 2>, scalar_prefetch = 0 : i64, scratch_operands = 0 : i64, tpu.core_type = #tpu.core_type<tc>, window_params = [{transform_indices = @transform_0, window_bounds = array<i64: 64, 16>}, {transform_indices = @transform_1, window_bounds = array<i64: 64, 16>}, {pipeline_mode = #tpu.pipeline_mode<synchronous>, transform_indices = @transform_2, window_bounds = array<i64: 16, 128>}, {pipeline_mode = #tpu.pipeline_mode<synchronous>, transform_indices = @transform_3, window_bounds = array<i64: 24, 64>}, {transform_indices = @transform_4, window_bounds = array<i64: 8, 128>}]} {
    %c0 = arith.constant 0 : index
    %c0_0 = arith.constant 0 : index
    %0 = vector.load %arg1[%c0, %c0_0] : memref<64x16xf32, #tpu.memory_space<vmem>>, vector<64x16xf32>
    %c0_1 = arith.constant 0 : index
    %c0_2 = arith.constant 0 : index
    %1 = vector.load %arg2[%c0_1, %c0_2] : memref<64x16xf32, #tpu.memory_space<vmem>>, vector<64x16xf32>
    %c0_3 = arith.constant 0 : index
    %c0_4 = arith.constant 0 : index
    %2 = vector.load %arg3[%c0_3, %c0_4] : memref<16x128xbf16, #tpu.memory_space<vmem>>, vector<16x128xbf16>
    %c0_5 = arith.constant 0 : index
    %c0_6 = arith.constant 0 : index
    %3 = vector.load %arg4[%c0_5, %c0_6] : memref<24x64xbf16, #tpu.memory_space<vmem>>, vector<24x64xbf16>
    %4 = arith.subf %0, %1 : vector<64x16xf32>
    %5 = arith.mulf %4, %4 : vector<64x16xf32>
    %cst = arith.constant dense<0.000000e+00> : vector<64xf32>
    %6 = vector.multi_reduction <add>, %5, %cst [1] : vector<64x16xf32> to vector<64xf32>
    %7 = vector.shape_cast %6 : vector<64xf32> to vector<64x1xf32>
    %cst_7 = arith.constant dense<0.000000e+00> : vector<1xf32>
    %8 = vector.multi_reduction <add>, %7, %cst_7 [0] : vector<64x1xf32> to vector<1xf32>
    %9 = vector.shape_cast %8 : vector<1xf32> to vector<1x1xf32>
    %cst_8 = arith.constant dense<0.000000e+00> : vector<64xf32>
    %10 = vector.multi_reduction <add>, %0, %cst_8 [1] : vector<64x16xf32> to vector<64xf32>
    %11 = vector.shape_cast %10 : vector<64xf32> to vector<64x1xf32>
    %cst_9 = arith.constant dense<0.000000e+00> : vector<1xf32>
    %12 = vector.multi_reduction <add>, %11, %cst_9 [0] : vector<64x1xf32> to vector<1xf32>
    %13 = vector.shape_cast %12 : vector<1xf32> to vector<1x1xf32>
    %cst_10 = arith.constant 9.765625E-4 : f32
    %14 = vector.broadcast %cst_10 : f32 to vector<1x1xf32>
    %15 = arith.mulf %13, %14 : vector<1x1xf32>
    %cst_11 = arith.constant dense<0.000000e+00> : vector<64xf32>
    %16 = vector.multi_reduction <add>, %1, %cst_11 [1] : vector<64x16xf32> to vector<64xf32>
    %17 = vector.shape_cast %16 : vector<64xf32> to vector<64x1xf32>
    %cst_12 = arith.constant dense<0.000000e+00> : vector<1xf32>
    %18 = vector.multi_reduction <add>, %17, %cst_12 [0] : vector<64x1xf32> to vector<1xf32>
    %19 = vector.shape_cast %18 : vector<1xf32> to vector<1x1xf32>
    %cst_13 = arith.constant 9.765625E-4 : f32
    %20 = vector.broadcast %cst_13 : f32 to vector<1x1xf32>
    %21 = arith.mulf %19, %20 : vector<1x1xf32>
    %22 = vector.broadcast %15 : vector<1x1xf32> to vector<64x16xf32>
    %23 = arith.subf %0, %22 : vector<64x16xf32>
    %24 = vector.broadcast %21 : vector<1x1xf32> to vector<64x16xf32>
    %25 = arith.subf %1, %24 : vector<64x16xf32>
    %26 = arith.truncf %23 : vector<64x16xf32> to vector<64x16xbf16>
    %27 = arith.truncf %25 : vector<64x16xf32> to vector<64x16xbf16>
    %28 = arith.mulf %23, %23 : vector<64x16xf32>
    %29 = arith.truncf %28 : vector<64x16xf32> to vector<64x16xbf16>
    %30 = arith.mulf %25, %25 : vector<64x16xf32>
    %31 = arith.truncf %30 : vector<64x16xf32> to vector<64x16xbf16>
    %32 = arith.mulf %23, %25 : vector<64x16xf32>
    %33 = arith.truncf %32 : vector<64x16xf32> to vector<64x16xbf16>
    %34 = tpu.concatenate %26, %27, %29, %31, %33 in 0 : vector<64x16xbf16>, vector<64x16xbf16>, vector<64x16xbf16>, vector<64x16xbf16>, vector<64x16xbf16> -> vector<320x16xbf16>
    %cst_14 = arith.constant dense<0.000000e+00> : vector<320x128xf32>
    %35 = tpu.matmul %34, %2, %cst_14 {dimension_numbers = #tpu.dot_dimension_numbers<[1], [0], [0], [1], [0, 0, 1, 1], [], []>} : vector<320x16xbf16>, vector<16x128xbf16>, vector<320x128xf32> -> vector<320x128xf32>
    %36 = vector.extract_strided_slice %35 {offsets = [0, 0], sizes = [64, 128], strides = [1, 1]} : vector<320x128xf32> to vector<64x128xf32>
    %37 = arith.truncf %36 : vector<64x128xf32> to vector<64x128xbf16>
    %cst_15 = arith.constant dense<0.000000e+00> : vector<24x128xf32>
    %38 = tpu.matmul %3, %37, %cst_15 {dimension_numbers = #tpu.dot_dimension_numbers<[1], [0], [0], [1], [0, 0, 1, 1], [], []>} : vector<24x64xbf16>, vector<64x128xbf16>, vector<24x128xf32> -> vector<24x128xf32>
    %39 = vector.extract_strided_slice %35 {offsets = [64, 0], sizes = [64, 128], strides = [1, 1]} : vector<320x128xf32> to vector<64x128xf32>
    %40 = arith.truncf %39 : vector<64x128xf32> to vector<64x128xbf16>
    %cst_16 = arith.constant dense<0.000000e+00> : vector<24x128xf32>
    %41 = tpu.matmul %3, %40, %cst_16 {dimension_numbers = #tpu.dot_dimension_numbers<[1], [0], [0], [1], [0, 0, 1, 1], [], []>} : vector<24x64xbf16>, vector<64x128xbf16>, vector<24x128xf32> -> vector<24x128xf32>
    %42 = vector.extract_strided_slice %35 {offsets = [128, 0], sizes = [64, 128], strides = [1, 1]} : vector<320x128xf32> to vector<64x128xf32>
    %43 = arith.truncf %42 : vector<64x128xf32> to vector<64x128xbf16>
    %cst_17 = arith.constant dense<0.000000e+00> : vector<24x128xf32>
    %44 = tpu.matmul %3, %43, %cst_17 {dimension_numbers = #tpu.dot_dimension_numbers<[1], [0], [0], [1], [0, 0, 1, 1], [], []>} : vector<24x64xbf16>, vector<64x128xbf16>, vector<24x128xf32> -> vector<24x128xf32>
    %45 = vector.extract_strided_slice %35 {offsets = [192, 0], sizes = [64, 128], strides = [1, 1]} : vector<320x128xf32> to vector<64x128xf32>
    %46 = arith.truncf %45 : vector<64x128xf32> to vector<64x128xbf16>
    %cst_18 = arith.constant dense<0.000000e+00> : vector<24x128xf32>
    %47 = tpu.matmul %3, %46, %cst_18 {dimension_numbers = #tpu.dot_dimension_numbers<[1], [0], [0], [1], [0, 0, 1, 1], [], []>} : vector<24x64xbf16>, vector<64x128xbf16>, vector<24x128xf32> -> vector<24x128xf32>
    %48 = vector.extract_strided_slice %35 {offsets = [256, 0], sizes = [64, 128], strides = [1, 1]} : vector<320x128xf32> to vector<64x128xf32>
    %49 = arith.truncf %48 : vector<64x128xf32> to vector<64x128xbf16>
    %cst_19 = arith.constant dense<0.000000e+00> : vector<24x128xf32>
    %50 = tpu.matmul %3, %49, %cst_19 {dimension_numbers = #tpu.dot_dimension_numbers<[1], [0], [0], [1], [0, 0, 1, 1], [], []>} : vector<24x64xbf16>, vector<64x128xbf16>, vector<24x128xf32> -> vector<24x128xf32>
    %51 = vector.broadcast %15 : vector<1x1xf32> to vector<24x128xf32>
    %52 = arith.addf %38, %51 : vector<24x128xf32>
    %53 = vector.broadcast %21 : vector<1x1xf32> to vector<24x128xf32>
    %54 = arith.addf %41, %53 : vector<24x128xf32>
    %55 = arith.mulf %52, %52 : vector<24x128xf32>
    %56 = arith.mulf %54, %54 : vector<24x128xf32>
    %57 = arith.mulf %52, %54 : vector<24x128xf32>
    %58 = arith.mulf %38, %38 : vector<24x128xf32>
    %59 = arith.subf %44, %58 : vector<24x128xf32>
    %cst_20 = arith.constant 0.000000e+00 : f32
    %60 = vector.broadcast %cst_20 : f32 to vector<24x128xf32>
    %61 = arith.maximumf %59, %60 : vector<24x128xf32>
    %62 = arith.mulf %41, %41 : vector<24x128xf32>
    %63 = arith.subf %47, %62 : vector<24x128xf32>
    %cst_21 = arith.constant 0.000000e+00 : f32
    %64 = vector.broadcast %cst_21 : f32 to vector<24x128xf32>
    %65 = arith.maximumf %63, %64 : vector<24x128xf32>
    %66 = arith.mulf %38, %41 : vector<24x128xf32>
    %67 = arith.subf %50, %66 : vector<24x128xf32>
    %cst_22 = arith.constant 2.000000e+00 : f32
    %68 = vector.broadcast %cst_22 : f32 to vector<24x128xf32>
    %69 = arith.mulf %68, %57 : vector<24x128xf32>
    %cst_23 = arith.constant 9.99999974E-5 : f32
    %70 = vector.broadcast %cst_23 : f32 to vector<24x128xf32>
    %71 = arith.addf %69, %70 : vector<24x128xf32>
    %cst_24 = arith.constant 2.000000e+00 : f32
    %72 = vector.broadcast %cst_24 : f32 to vector<24x128xf32>
    %73 = arith.mulf %72, %67 : vector<24x128xf32>
    %cst_25 = arith.constant 8.99999984E-4 : f32
    %74 = vector.broadcast %cst_25 : f32 to vector<24x128xf32>
    %75 = arith.addf %73, %74 : vector<24x128xf32>
    %76 = arith.mulf %71, %75 : vector<24x128xf32>
    %77 = arith.addf %55, %56 : vector<24x128xf32>
    %cst_26 = arith.constant 9.99999974E-5 : f32
    %78 = vector.broadcast %cst_26 : f32 to vector<24x128xf32>
    %79 = arith.addf %77, %78 : vector<24x128xf32>
    %80 = arith.addf %61, %65 : vector<24x128xf32>
    %cst_27 = arith.constant 8.99999984E-4 : f32
    %81 = vector.broadcast %cst_27 : f32 to vector<24x128xf32>
    %82 = arith.addf %80, %81 : vector<24x128xf32>
    %83 = arith.mulf %79, %82 : vector<24x128xf32>
    %84 = tpu.iota {dimensions = array<i32: 1>} : vector<24x128xi32>
    %c6_i32 = arith.constant 6 : i32
    %85 = vector.broadcast %c6_i32 : i32 to vector<24x128xi32>
    %86 = arith.cmpi slt, %84, %85 : vector<24x128xi32>
    %87 = tpu.reciprocal %83 {approx = true} : vector<24x128xf32> -> vector<24x128xf32>
    %88 = arith.mulf %76, %87 : vector<24x128xf32>
    %cst_28 = arith.constant 0.000000e+00 : f32
    %89 = vector.broadcast %cst_28 : f32 to vector<24x128xf32>
    %90 = arith.select %86, %88, %89 : vector<24x128xi1>, vector<24x128xf32>
    %cst_29 = arith.constant dense<0.000000e+00> : vector<24xf32>
    %91 = vector.multi_reduction <add>, %90, %cst_29 [1] : vector<24x128xf32> to vector<24xf32>
    %92 = vector.shape_cast %91 : vector<24xf32> to vector<24x1xf32>
    %cst_30 = arith.constant dense<0.000000e+00> : vector<1xf32>
    %93 = vector.multi_reduction <add>, %92, %cst_30 [0] : vector<24x1xf32> to vector<1xf32>
    %94 = vector.shape_cast %93 : vector<1xf32> to vector<1x1xf32>
    %95 = tpu.iota {dimensions = array<i32: 0>} : vector<8x128xi32>
    %96 = tpu.iota {dimensions = array<i32: 1>} : vector<8x128xi32>
    %cst_31 = arith.constant 0.000000e+00 : f32
    %97 = vector.broadcast %cst_31 : f32 to vector<8x128xf32>
    %c0_i32 = arith.constant 0 : i32
    %98 = vector.broadcast %c0_i32 : i32 to vector<8x128xi32>
    %99 = arith.cmpi eq, %95, %98 : vector<8x128xi32>
    %c0_i32_32 = arith.constant 0 : i32
    %100 = vector.broadcast %c0_i32_32 : i32 to vector<8x128xi32>
    %101 = arith.cmpi eq, %96, %100 : vector<8x128xi32>
    %102 = arith.andi %99, %101 : vector<8x128xi1>
    %103 = vector.shape_cast %9 : vector<1x1xf32> to vector<1x1xf32>
    %104 = vector.broadcast %103 : vector<1x1xf32> to vector<8x128xf32>
    %105 = arith.select %102, %104, %97 : vector<8x128xi1>, vector<8x128xf32>
    %c0_i32_33 = arith.constant 0 : i32
    %106 = vector.broadcast %c0_i32_33 : i32 to vector<8x128xi32>
    %107 = arith.cmpi eq, %95, %106 : vector<8x128xi32>
    %c1_i32 = arith.constant 1 : i32
    %108 = vector.broadcast %c1_i32 : i32 to vector<8x128xi32>
    %109 = arith.cmpi eq, %96, %108 : vector<8x128xi32>
    %110 = arith.andi %107, %109 : vector<8x128xi1>
    %111 = vector.shape_cast %94 : vector<1x1xf32> to vector<1x1xf32>
    %112 = vector.broadcast %111 : vector<1x1xf32> to vector<8x128xf32>
    %113 = arith.select %110, %112, %97 : vector<8x128xi1>, vector<8x128xf32>
    %114 = arith.addf %105, %113 : vector<8x128xf32>
    %c0_34 = arith.constant 0 : index
    %c0_35 = arith.constant 0 : index
    %115 = vector.load %arg5[%c0_34, %c0_35] : memref<8x128xf32, #tpu.memory_space<vmem>>, vector<8x128xf32>
    tpu.vector_store %arg5[%c0_34, %c0_35], %114 {strides = array<i32>} : memref<8x128xf32, #tpu.memory_space<vmem>>, vector<8x128xf32>,
    return
  }
  func.func @transform_0(%arg0: i32) -> (i32, i32) {
    %c0_i32 = arith.constant 0 : i32
    %c0_i32_0 = arith.constant 0 : i32
    return %arg0, %c0_i32 : i32, i32
  }
  func.func @transform_1(%arg0: i32) -> (i32, i32) {
    %c0_i32 = arith.constant 0 : i32
    %c0_i32_0 = arith.constant 0 : i32
    return %arg0, %c0_i32 : i32, i32
  }
  func.func @transform_2(%arg0: i32) -> (i32, i32) {
    %c0_i32 = arith.constant 0 : i32
    %c0_i32_0 = arith.constant 0 : i32
    %c0_i32_1 = arith.constant 0 : i32
    return %c0_i32, %c0_i32_0 : i32, i32
  }
  func.func @transform_3(%arg0: i32) -> (i32, i32) {
    %c0_i32 = arith.constant 0 : i32
    %c0_i32_0 = arith.constant 0 : i32
    %c0_i32_1 = arith.constant 0 : i32
    return %c0_i32, %c0_i32_0 : i32, i32
  }
  func.func @transform_4(%arg0: i32) -> (i32, i32) {
    %c0_i32 = arith.constant 0 : i32
    %c0_i32_0 = arith.constant 0 : i32
    return %arg0, %c0_i32 : i32, i32
  }
}

</mosaic_0001>

<llo_original>
// kernel: tpu_custom_call.1
$region0: #{tpu_custom_call.1}
  #allocation0 [shape = 'u32[]', space=smem, size = 0x4, offset = 0x4, fixed_abs, tag = 'smem constant byte address 0x4 - core index']
  #allocation1 [shape = 'u32[144,128]{1,0:T(1,128)}', space=vmem, size = 0x12000, scoped, tag = 'internal scratch']
  %s0 = inlined_call_operand.vmem [shape: f32[128,16], index: 0, kind: input, shape index: {}]
  %s1 = inlined_call_operand.vmem [shape: f32[128,16], index: 1, kind: input, shape index: {}]
  %s2 = inlined_call_operand.vmem [shape: bf16[16,128], index: 2, kind: input, shape index: {}]
  %s3 = inlined_call_operand.vmem [shape: bf16[24,64], index: 3, kind: input, shape index: {}]
  %s4 = inlined_call_operand.hbm [shape: f32[16,128], index: 4, kind: output, shape index: {}]
  %s5 = sld [smem:[#allocation0]]
  $region49: #{tpu_custom_call.1} parent=0
    _
  %s7 = ssub.s32 1, %s5
  %s8 = scalar_select 0, %s7, %s5
  $region1: #{tpu_custom_call.1} parent=0
    #allocation2 [shape = 'u8[8192]{0}', space=vmem, size = 0x2000, scoped, tag = 'output window, operand 0']
    #allocation3 [shape = 's32[2]{0}', space=sflag, size = 0x8, scoped, tag = 'scoped memory for tpu_custom_call.1']
    %9 = vsyncpa [#allocation3], 0
    %s10 = scalar_lea.sflag [#allocation3], 1
    %11 = vsyncpa %s10, 0
    loop: start=0, step=1, limit=4
    $region2: #{tpu_custom_call.1} parent=1 // loop_pre_header
      _
    $region3: #{tpu_custom_call.1} parent=1 // loop_header
      %s13 = sphi 0, %s17
      %p14 = scmp.ge.s32.totalorder %s13, 4
      %s23 = sphi 0, %s25
      %s26 = sphi 0, %s23
      %s27 = sphi 0, %s26
      %s43 = sphi 0, %s27
      %s49 = sphi 0, %s51
      %s52 = sphi 0, %s49
      %s53 = sphi 0, %s52
      %s69 = sphi 0, %s53
      %s73 = sphi 0, %s73
      %s75 = sphi 0, %s73
      %s76 = sphi 0, %s75
      %s90 = sphi 0, %s76
      %s94 = sphi 0, %s94
      %s96 = sphi 0, %s94
      %s97 = sphi 0, %s96
      %s111 = sphi 0, %s97
      %s117 = sphi 0, %s119
      %s120 = sphi 0, %s117
      %s121 = sphi 0, %s120
      %s137 = sphi 0, %s121
    $region4: #{tpu_custom_call.1} parent=1 // loop_header_branch
      %16 = sbr.rel (%p14) target = $region8
    $region5: #{tpu_custom_call.1} parent=1 // loop_body
      %s18 = ssub.s32 %s13, 1
      %s19 = ssub.s32 %s13, 2
      %s20 = sadd.s32 %s13, 1
      %s21 = ssub.s32 %s13, %s20
      %p22 = scmp.eq.s32.totalorder %s21, 0
      %s24 = sadd.s32 %s23, 1
      %s25 = scalar_select %p22, %s23, %s24
      %p28 = pneg %p22
      %p29 = scmp.eq.s32.totalorder %s13, 1
      %p30 = por %p28, %p29
      %p31 = scmp.ne.s32.totalorder %s23, %s26
      %p32 = scmp.eq.s32.totalorder %s13, 0
      %p33 = por %p31, %p32
      %p34 = scmp.ne.s32.totalorder %s23, %s26
      %p35 = scmp.eq.s32.totalorder %s18, 1
      %p36 = por %p34, %p35
      %p37 = scmp.ne.s32.totalorder %s26, %s27
      %p38 = scmp.eq.s32.totalorder %s18, 0
      %p39 = por %p37, %p38
      %p40 = scmp.ne.s32.totalorder %s26, %s27
      %p41 = scmp.eq.s32.totalorder %s19, 1
      %p42 = por %p40, %p41
      %p44 = scmp.ne.s32.totalorder %s27, %s43
      %p45 = scmp.eq.s32.totalorder %s19, 0
      %p46 = por %p44, %p45
      %s47 = ssub.s32 %s13, %s20
      %p48 = scmp.eq.s32.totalorder %s47, 0
      %s50 = sadd.s32 %s49, 1
      %s51 = scalar_select %p48, %s49, %s50
      %p54 = pneg %p48
      %p55 = scmp.eq.s32.totalorder %s13, 1
      %p56 = por %p54, %p55
      %p57 = scmp.ne.s32.totalorder %s49, %s52
      %p58 = scmp.eq.s32.totalorder %s13, 0
      %p59 = por %p57, %p58
      %p60 = scmp.ne.s32.totalorder %s49, %s52
      %p61 = scmp.eq.s32.totalorder %s18, 1
      %p62 = por %p60, %p61
      %p63 = scmp.ne.s32.totalorder %s52, %s53
      %p64 = scmp.eq.s32.totalorder %s18, 0
      %p65 = por %p63, %p64
      %p66 = scmp.ne.s32.totalorder %s52, %s53
      %p67 = scmp.eq.s32.totalorder %s19, 1
      %p68 = por %p66, %p67
      %p70 = scmp.ne.s32.totalorder %s53, %s69
      %p71 = scmp.eq.s32.totalorder %s19, 0
      %p72 = por %p70, %p71
      %s74 = sadd.s32 %s73, 1
      %p77 = scmp.eq.s32.totalorder %s13, 1
      %p78 = scmp.ne.s32.totalorder %s73, %s75
      %p79 = scmp.eq.s32.totalorder %s13, 0
      %p80 = por %p78, %p79
      %p81 = scmp.ne.s32.totalorder %s73, %s75
      %p82 = scmp.eq.s32.totalorder %s18, 1
      %p83 = por %p81, %p82
      %p84 = scmp.ne.s32.totalorder %s75, %s76
      %p85 = scmp.eq.s32.totalorder %s18, 0
      %p86 = por %p84, %p85
      %p87 = scmp.ne.s32.totalorder %s75, %s76
      %p88 = scmp.eq.s32.totalorder %s19, 1
      %p89 = por %p87, %p88
      %p91 = scmp.ne.s32.totalorder %s76, %s90
      %p92 = scmp.eq.s32.totalorder %s19, 0
      %p93 = por %p91, %p92
      %s95 = sadd.s32 %s94, 1
      %p98 = scmp.eq.s32.totalorder %s13, 1
      %p99 = scmp.ne.s32.totalorder %s94, %s96
      %p100 = scmp.eq.s32.totalorder %s13, 0
      %p101 = por %p99, %p100
      %p102 = scmp.ne.s32.totalorder %s94, %s96
      %p103 = scmp.eq.s32.totalorder %s18, 1
      %p104 = por %p102, %p103
      %p105 = scmp.ne.s32.totalorder %s96, %s97
      %p106 = scmp.eq.s32.totalorder %s18, 0
      %p107 = por %p105, %p106
      %p108 = scmp.ne.s32.totalorder %s96, %s97
      %p109 = scmp.eq.s32.totalorder %s19, 1
      %p110 = por %p108, %p109
      %p112 = scmp.ne.s32.totalorder %s97, %s111
      %p113 = scmp.eq.s32.totalorder %s19, 0
      %p114 = por %p112, %p113
      %s115 = ssub.s32 %s13, %s20
      %p116 = scmp.eq.s32.totalorder %s115, 0
      %s118 = sadd.s32 %s117, 1
      %s119 = scalar_select %p116, %s117, %s118
      %p122 = pneg %p116
      %p123 = scmp.eq.s32.totalorder %s13, 1
      %p124 = por %p122, %p123
      %p125 = scmp.ne.s32.totalorder %s117, %s120
      %p126 = scmp.eq.s32.totalorder %s13, 0
      %p127 = por %p125, %p126
      %p128 = scmp.ne.s32.totalorder %s117, %s120
      %p129 = scmp.eq.s32.totalorder %s18, 1
      %p130 = por %p128, %p129
      %p131 = scmp.ne.s32.totalorder %s120, %s121
      %p132 = scmp.eq.s32.totalorder %s18, 0
      %p133 = por %p131, %p132
      %p134 = scmp.ne.s32.totalorder %s120, %s121
      %p135 = scmp.eq.s32.totalorder %s19, 1
      %p136 = por %p134, %p135
      %p138 = scmp.ne.s32.totalorder %s121, %s137
      %p139 = scmp.eq.s32.totalorder %s19, 0
      %p140 = por %p138, %p139
      %p141 = scmp.le.s32.totalorder 1, %s13
      %p142 = scmp.lt.s32.totalorder %s13, 3
      %p143 = pnand %p141, %p142
      %p144 = pneg %p143
      // Predicated region
      $region9: #{tpu_custom_call.1} parent=5 // pred_check
        _
      $region10: #{tpu_custom_call.1} parent=5 // pred_check_branch
        %146 = sbr.rel (%p143) target = $region12
      $region11: #{tpu_custom_call.1} parent=5 // pred_region
        %s147 = ssub.s32 %s13, 1
        // Predicated region
        $region13: #{tpu_custom_call.1} parent=11 // pred_check
          %p148 = pneg %p86
        $region14: #{tpu_custom_call.1} parent=11 // pred_check_branch
          %150 = sbr.rel (%p148) target = $region16
        $region15: #{tpu_custom_call.1} parent=11 // pred_region
          _
        $region16: #{tpu_custom_call.1} parent=11 // pred_fallthru
          _
        // Predicated region
        $region17: #{tpu_custom_call.1} parent=11 // pred_check
          %p151 = pneg %p107
        $region18: #{tpu_custom_call.1} parent=11 // pred_check_branch
          %153 = sbr.rel (%p151) target = $region20
        $region19: #{tpu_custom_call.1} parent=11 // pred_region
          _
        $region20: #{tpu_custom_call.1} parent=11 // pred_fallthru
          _
      $region12: #{tpu_custom_call.1} parent=5 // pred_fallthru
        _
      %p154 = scmp.lt.s32.totalorder %s13, 2
      // Predicated region
      $region21: #{tpu_custom_call.1} parent=5 // pred_check
        %p155 = pneg %p154
      $region22: #{tpu_custom_call.1} parent=5 // pred_check_branch
        %157 = sbr.rel (%p155) target = $region24
      $region23: #{tpu_custom_call.1} parent=5 // pred_region
        // Predicated region
        $region25: #{tpu_custom_call.1} parent=23 // pred_check
          %p158 = pneg %p33
        $region26: #{tpu_custom_call.1} parent=23 // pred_check_branch
          %160 = sbr.rel (%p158) target = $region28
        $region27: #{tpu_custom_call.1} parent=23 // pred_region
          %s161 = smul.u32 8, %s13
          %p162 = scmp.lt.s32.totalorder %s161, 15
          %s163 = scalar_select %p162, %s161, 15
          %s164 = smul.addr %s163, 8
          %s165 = scalar_lea.vmem %s0, %s164
          %s166 = smul.u32 8, %s13
        $region28: #{tpu_custom_call.1} parent=23 // pred_fallthru
          _
        // Predicated region
        $region29: #{tpu_custom_call.1} parent=23 // pred_check
          %p167 = pneg %p59
        $region30: #{tpu_custom_call.1} parent=23 // pred_check_branch
          %169 = sbr.rel (%p167) target = $region32
        $region31: #{tpu_custom_call.1} parent=23 // pred_region
          %s170 = smul.u32 8, %s13
          %p171 = scmp.lt.s32.totalorder %s170, 15
          %s172 = scalar_select %p171, %s170, 15
          %s173 = smul.addr %s172, 8
          %s174 = scalar_lea.vmem %s1, %s173
          %s175 = smul.u32 8, %s13
        $region32: #{tpu_custom_call.1} parent=23 // pred_fallthru
          _
      $region24: #{tpu_custom_call.1} parent=5 // pred_fallthru
        _
      %p176 = scmp.le.s32.totalorder 1, %s13
      %p177 = scmp.lt.s32.totalorder %s13, 3
      %p178 = pnand %p176, %p177
      %p179 = pneg %p178
      // Predicated region
      $region33: #{tpu_custom_call.1} parent=5 // pred_check
        _
      $region34: #{tpu_custom_call.1} parent=5 // pred_check_branch
        %181 = sbr.rel (%p178) target = $region36
      $region35: #{tpu_custom_call.1} parent=5 // pred_region
        %s182 = ssub.s32 %s13, 1
        %s183 = smul.u32 8, %s18
        %p184 = scmp.lt.s32.totalorder %s183, 15
        %s185 = scalar_select %p184, %s183, 15
        %s186 = smul.addr %s185, 8
        %s187 = scalar_lea.vmem %s0, %s186
        %p188 = pneg %p39
        %p189 = pneg %p36
        %s190 = smul.u32 8, %s18
        %p191 = scmp.lt.s32.totalorder %s190, 15
        %s192 = scalar_select %p191, %s190, 15
        %s193 = smul.addr %s192, 8
        %s194 = scalar_lea.vmem %s1, %s193
        %p195 = pneg %p65
        %p196 = pneg %p62
        %p197 = pneg %p86
        %p198 = pneg %p83
        %p199 = pneg %p107
        %p200 = pneg %p104
        %p201 = pneg %p133
        %p202 = pneg %p130
        %s203 = sand.u32 %s120, 1
        %s204 = scalar_lea.sflag [#allocation3], %s203
        %s205 = sand.u32 %s120, 1
        %s206 = smul.addr %s205, 8
        %s207 = scalar_lea.vmem [#allocation2], %s206
        %s208 = smul.u32 8, %s18
        %p209 = scmp.lt.s32.totalorder %s208, 15
        %s210 = scalar_select %p209, %s208, 15
        %s211 = smul.addr %s210, 8
        %s212 = scalar_lea.vmem %s0, %s211
        %s213 = smul.u32 8, %s18
        %s214 = smul.u32 8, %s18
        %p215 = scmp.lt.s32.totalorder %s214, 15
        %s216 = scalar_select %p215, %s214, 15
        %s217 = smul.addr %s216, 8
        %s218 = scalar_lea.vmem %s1, %s217
        %s219 = smul.u32 8, %s18
        %v221 = vld [vmem:[%s212] sm:$0xff]
        %v222 = vld [vmem:[%s212 + $0x8] sm:$0xff]
        %v223 = vld [vmem:[%s212 + $0x10] sm:$0xff]
        %v224 = vld [vmem:[%s212 + $0x18] sm:$0xff]
        %v225 = vld [vmem:[%s212 + $0x20] sm:$0xff]
        %v226 = vld [vmem:[%s212 + $0x28] sm:$0xff]
        %v227 = vld [vmem:[%s212 + $0x30] sm:$0xff]
        %v228 = vld [vmem:[%s212 + $0x38] sm:$0xff]
        %v229 = vld [vmem:[%s218] sm:$0xff]
        %v230 = vld [vmem:[%s218 + $0x8] sm:$0xff]
        %v231 = vld [vmem:[%s218 + $0x10] sm:$0xff]
        %v232 = vld [vmem:[%s218 + $0x18] sm:$0xff]
        %v233 = vld [vmem:[%s218 + $0x20] sm:$0xff]
        %v234 = vld [vmem:[%s218 + $0x28] sm:$0xff]
        %v235 = vld [vmem:[%s218 + $0x30] sm:$0xff]
        %v236 = vld [vmem:[%s218 + $0x38] sm:$0xff]
        %v237 = vld [vmem:[%s2] sm:$0xf]
        %v238 = vld [vmem:[%s2 + $0x4] sm:$0xf]
        %v239 = vld [vmem:[%s3] sm:$0xf]
        %v240 = vld [vmem:[%s3 + $0x4] sm:$0xf]
        %v241 = vld [vmem:[%s3 + $0x8] sm:$0xf]
        %v242 = vsub.f32 %v221, %v229
        %v243 = vsub.f32 %v222, %v230
        %v244 = vsub.f32 %v223, %v231
        %v245 = vsub.f32 %v224, %v232
        %v246 = vsub.f32 %v225, %v233
        %v247 = vsub.f32 %v226, %v234
        %v248 = vsub.f32 %v227, %v235
        %v249 = vsub.f32 %v228, %v236
        %v250 = vmul.f32 %v242, %v242
        %v251 = vmul.f32 %v243, %v243
        %v252 = vmul.f32 %v244, %v244
        %v253 = vmul.f32 %v245, %v245
        %v254 = vmul.f32 %v246, %v246
        %v255 = vmul.f32 %v247, %v247
        %v256 = vmul.f32 %v248, %v248
        %v257 = vmul.f32 %v249, %v249
        %vm258 = vcmask 130048
        %v259 = vsel %vm258, %v250, 0.0
        %260 = vadd.xlane.f32.xlu0 %v259
        %v261 = vpop.xlane.xlu0 %260
        %v262 = vsel %vm258, %v251, 0.0
        %263 = vadd.xlane.f32.xlu0 %v262
        %v264 = vpop.xlane.xlu0 %263
        %v265 = vsel %vm258, %v252, 0.0
        %266 = vadd.xlane.f32.xlu0 %v265
        %v267 = vpop.xlane.xlu0 %266
        %v268 = vsel %vm258, %v253, 0.0
        %269 = vadd.xlane.f32.xlu0 %v268
        %v270 = vpop.xlane.xlu0 %269
        %v271 = vsel %vm258, %v254, 0.0
        %272 = vadd.xlane.f32.xlu0 %v271
        %v273 = vpop.xlane.xlu0 %272
        %v274 = vsel %vm258, %v255, 0.0
        %275 = vadd.xlane.f32.xlu0 %v274
        %v276 = vpop.xlane.xlu0 %275
        %v277 = vsel %vm258, %v256, 0.0
        %278 = vadd.xlane.f32.xlu0 %v277
        %v279 = vpop.xlane.xlu0 %278
        %v280 = vsel %vm258, %v257, 0.0
        %281 = vadd.xlane.f32.xlu0 %v280
        %v282 = vpop.xlane.xlu0 %281
        %v283 = vadd.f32 %v261, %v264
        %v284 = vadd.f32 %v283, %v267
        %v285 = vadd.f32 %v284, %v270
        %v286 = vadd.f32 %v285, %v273
        %v287 = vadd.f32 %v286, %v276
        %v288 = vadd.f32 %v287, %v279
        %v289 = vadd.f32 %v288, %v282
        %v290 = vrot.slane %v289, 4
        %v291 = vadd.f32 %v289, %v290
        %v292 = vrot.slane %v291, 2
        %v293 = vadd.f32 %v291, %v292
        %v294 = vrot.slane %v293, 1
        %v295 = vadd.f32 %v293, %v294
        %v296 = vsel %vm258, %v221, 0.0
        %297 = vadd.xlane.f32.xlu0 %v296
        %v298 = vpop.xlane.xlu0 %297
        %v299 = vsel %vm258, %v222, 0.0
        %300 = vadd.xlane.f32.xlu0 %v299
        %v301 = vpop.xlane.xlu0 %300
        %v302 = vsel %vm258, %v223, 0.0
        %303 = vadd.xlane.f32.xlu0 %v302
        %v304 = vpop.xlane.xlu0 %303
        %v305 = vsel %vm258, %v224, 0.0
        %306 = vadd.xlane.f32.xlu0 %v305
        %v307 = vpop.xlane.xlu0 %306
        %v308 = vsel %vm258, %v225, 0.0
        %309 = vadd.xlane.f32.xlu0 %v308
        %v310 = vpop.xlane.xlu0 %309
        %v311 = vsel %vm258, %v226, 0.0
        %312 = vadd.xlane.f32.xlu0 %v311
        %v313 = vpop.xlane.xlu0 %312
        %v314 = vsel %vm258, %v227, 0.0
        %315 = vadd.xlane.f32.xlu0 %v314
        %v316 = vpop.xlane.xlu0 %315
        %v317 = vsel %vm258, %v228, 0.0
        %318 = vadd.xlane.f32.xlu0 %v317
        %v319 = vpop.xlane.xlu0 %318
        %v320 = vadd.f32 %v298, %v301
        %v321 = vadd.f32 %v320, %v304
        %v322 = vadd.f32 %v321, %v307
        %v323 = vadd.f32 %v322, %v310
        %v324 = vadd.f32 %v323, %v313
        %v325 = vadd.f32 %v324, %v316
        %v326 = vadd.f32 %v325, %v319
        %v327 = vrot.slane %v326, 4
        %v328 = vadd.f32 %v326, %v327
        %v329 = vrot.slane %v328, 2
        %v330 = vadd.f32 %v328, %v329
        %v331 = vrot.slane %v330, 1
        %v332 = vadd.f32 %v330, %v331
        %v333 = vmul.f32 %v332, 0.0009765625
        %v334 = vsel %vm258, %v229, 0.0
        %335 = vadd.xlane.f32.xlu0 %v334
        %v336 = vpop.xlane.xlu0 %335
        %v337 = vsel %vm258, %v230, 0.0
        %338 = vadd.xlane.f32.xlu0 %v337
        %v339 = vpop.xlane.xlu0 %338
        %v340 = vsel %vm258, %v231, 0.0
        %341 = vadd.xlane.f32.xlu0 %v340
        %v342 = vpop.xlane.xlu0 %341
        %v343 = vsel %vm258, %v232, 0.0
        %344 = vadd.xlane.f32.xlu0 %v343
        %v345 = vpop.xlane.xlu0 %344
        %v346 = vsel %vm258, %v233, 0.0
        %347 = vadd.xlane.f32.xlu0 %v346
        %v348 = vpop.xlane.xlu0 %347
        %v349 = vsel %vm258, %v234, 0.0
        %350 = vadd.xlane.f32.xlu0 %v349
        %v351 = vpop.xlane.xlu0 %350
        %v352 = vsel %vm258, %v235, 0.0
        %353 = vadd.xlane.f32.xlu0 %v352
        %v354 = vpop.xlane.xlu0 %353
        %v355 = vsel %vm258, %v236, 0.0
        %356 = vadd.xlane.f32.xlu0 %v355
        %v357 = vpop.xlane.xlu0 %356
        %v358 = vadd.f32 %v336, %v339
        %v359 = vadd.f32 %v358, %v342
        %v360 = vadd.f32 %v359, %v345
        %v361 = vadd.f32 %v360, %v348
        %v362 = vadd.f32 %v361, %v351
        %v363 = vadd.f32 %v362, %v354
        %v364 = vadd.f32 %v363, %v357
        %v365 = vrot.slane %v364, 4
        %v366 = vadd.f32 %v364, %v365
        %v367 = vrot.slane %v366, 2
        %v368 = vadd.f32 %v366, %v367
        %v369 = vrot.slane %v368, 1
        %v370 = vadd.f32 %v368, %v369
        %v371 = vmul.f32 %v370, 0.0009765625
        %v372 = vsub.f32 %v221, %v333
        %v373 = vsub.f32 %v222, %v333
        %v374 = vsub.f32 %v223, %v333
        %v375 = vsub.f32 %v224, %v333
        %v376 = vsub.f32 %v225, %v333
        %v377 = vsub.f32 %v226, %v333
        %v378 = vsub.f32 %v227, %v333
        %v379 = vsub.f32 %v228, %v333
        %v380 = vsub.f32 %v229, %v371
        %v381 = vsub.f32 %v230, %v371
        %v382 = vsub.f32 %v231, %v371
        %v383 = vsub.f32 %v232, %v371
        %v384 = vsub.f32 %v233, %v371
        %v385 = vsub.f32 %v234, %v371
        %v386 = vsub.f32 %v235, %v371
        %v387 = vsub.f32 %v236, %v371
        %v388 = vpack.c.bf16 %v373, %v372
        %v389 = vpack.c.bf16 %v375, %v374
        %v390 = vpack.c.bf16 %v377, %v376
        %v391 = vpack.c.bf16 %v379, %v378
        %v392 = vpack.c.bf16 %v381, %v380
        %v393 = vpack.c.bf16 %v383, %v382
        %v394 = vpack.c.bf16 %v385, %v384
        %v395 = vpack.c.bf16 %v387, %v386
        %v396 = vmul.f32 %v372, %v372
        %v397 = vmul.f32 %v373, %v373
        %v398 = vmul.f32 %v374, %v374
        %v399 = vmul.f32 %v375, %v375
        %v400 = vmul.f32 %v376, %v376
        %v401 = vmul.f32 %v377, %v377
        %v402 = vmul.f32 %v378, %v378
        %v403 = vmul.f32 %v379, %v379
        %v404 = vpack.c.bf16 %v397, %v396
        %v405 = vpack.c.bf16 %v399, %v398
        %v406 = vpack.c.bf16 %v401, %v400
        %v407 = vpack.c.bf16 %v403, %v402
        %v408 = vmul.f32 %v380, %v380
        %v409 = vmul.f32 %v381, %v381
        %v410 = vmul.f32 %v382, %v382
        %v411 = vmul.f32 %v383, %v383
        %v412 = vmul.f32 %v384, %v384
        %v413 = vmul.f32 %v385, %v385
        %v414 = vmul.f32 %v386, %v386
        %v415 = vmul.f32 %v387, %v387
        %v416 = vpack.c.bf16 %v409, %v408
        %v417 = vpack.c.bf16 %v411, %v410
        %v418 = vpack.c.bf16 %v413, %v412
        %v419 = vpack.c.bf16 %v415, %v414
        %v420 = vmul.f32 %v372, %v380
        %v421 = vmul.f32 %v373, %v381
        %v422 = vmul.f32 %v374, %v382
        %v423 = vmul.f32 %v375, %v383
        %v424 = vmul.f32 %v376, %v384
        %v425 = vmul.f32 %v377, %v385
        %v426 = vmul.f32 %v378, %v386
        %v427 = vmul.f32 %v379, %v387
        %v428 = vpack.c.bf16 %v421, %v420
        %v429 = vpack.c.bf16 %v423, %v422
        %v430 = vpack.c.bf16 %v425, %v424
        %v431 = vpack.c.bf16 %v427, %v426
        %v434 = vunpack.c.l.b16 %v237
        %v435 = vunpack.c.l.b16 %v238
        %v436 = vpack.c.b16 %v435, %v434
        %v439 = vsel %vm258, %v388, 0
        %v442 = vsel %vm258, %v389, 0
        %v445 = vsel %vm258, %v390, 0
        %v448 = vsel %vm258, %v391, 0
        %v451 = vsel %vm258, %v392, 0
        %v454 = vsel %vm258, %v393, 0
        %v457 = vsel %vm258, %v394, 0
        %v460 = vsel %vm258, %v395, 0
        %v463 = vsel %vm258, %v404, 0
        %v466 = vsel %vm258, %v405, 0
        %v469 = vsel %vm258, %v406, 0
        %v472 = vsel %vm258, %v407, 0
        %v475 = vsel %vm258, %v416, 0
        %v478 = vsel %vm258, %v417, 0
        %v481 = vsel %vm258, %v418, 0
        %v484 = vsel %vm258, %v419, 0
        %v487 = vsel %vm258, %v428, 0
        %v490 = vsel %vm258, %v429, 0
        %v493 = vsel %vm258, %v430, 0
        %v496 = vsel %vm258, %v431, 0
        %498 = vmatprep.subr.bf16.mxu0 0
        %499 = vmatpush1.bf16.msra.mxu0 %v436
        %500 = vmatprep.subr.bf16.mxu0 0
        %501 = vmatpush1.bf16.msra.mxu0 0
        %502 = vmatprep.subr.bf16.mxu0 0
        %503 = vmatpush1.bf16.msra.mxu0 0
        %504 = vmatprep.subr.bf16.mxu0 0
        %505 = vmatpush1.bf16.msra.mxu0 0
        %506 = vmatprep.subr.bf16.mxu0 0
        %507 = vmatpush1.bf16.msra.mxu0 0
        %508 = vmatprep.subr.bf16.mxu0 0
        %509 = vmatpush1.bf16.msra.mxu0 0
        %510 = vmatprep.subr.bf16.mxu0 0
        %511 = vmatpush1.bf16.msra.mxu0 0
        %512 = vmatprep.subr.bf16.mxu0 0
        %513 = vmatpush1.bf16.msra.mxu0 0
        %514 = vmatprep.subr.bf16.mxu0 0
        %515 = vmatpush1.bf16.msra.mxu0 0
        %516 = vmatprep.subr.bf16.mxu0 0
        %517 = vmatpush1.bf16.msra.mxu0 0
        %518 = vmatprep.subr.bf16.mxu0 0
        %519 = vmatpush1.bf16.msra.mxu0 0
        %520 = vmatprep.subr.bf16.mxu0 0
        %521 = vmatpush1.bf16.msra.mxu0 0
        %522 = vmatprep.subr.bf16.mxu0 0
        %523 = vmatpush1.bf16.msra.mxu0 0
        %524 = vmatprep.subr.bf16.mxu0 0
        %525 = vmatpush1.bf16.msra.mxu0 0
        %526 = vmatprep.subr.bf16.mxu0 0
        %527 = vmatpush1.bf16.msra.mxu0 0
        %528 = vmatprep.subr.bf16.mxu0 0
        %529 = vmatpush1.bf16.msra.mxu0 0
        %530 = vmatprep.mubr.bf16.mxu0 0
        %531 = vmatmul.mubr.bf16.gmra.mrb[0].mxu0 %v439
        %v532 = vpop.f32.mrb[0].mxu0
        %v533 = vadd.f32 0.0, %v532
        %v534 = vpop.f32.mrb[0].mxu0
        %v535 = vpop.f32.mrb[0].mxu0
        %v536 = vadd.f32 0.0, %v535
        %v537 = vpop.f32.mrb[0].mxu0
        %538 = vmatprep.mubr.bf16.mxu0 0
        %539 = vmatmul.mubr.bf16.gmra.mrb[0].mxu0 %v442
        %v540 = vpop.f32.mrb[0].mxu0
        %v541 = vadd.f32 0.0, %v540
        %v542 = vpop.f32.mrb[0].mxu0
        %v543 = vpop.f32.mrb[0].mxu0
        %v544 = vadd.f32 0.0, %v543
        %v545 = vpop.f32.mrb[0].mxu0
        %546 = vmatprep.mubr.bf16.mxu0 0
        %547 = vmatmul.mubr.bf16.gmra.mrb[0].mxu0 %v445
        %v548 = vpop.f32.mrb[0].mxu0
        %v549 = vadd.f32 0.0, %v548
        %v550 = vpop.f32.mrb[0].mxu0
        %v551 = vpop.f32.mrb[0].mxu0
        %v552 = vadd.f32 0.0, %v551
        %v553 = vpop.f32.mrb[0].mxu0
        %554 = vmatprep.mubr.bf16.mxu0 0
        %555 = vmatmul.mubr.bf16.gmra.mrb[0].mxu0 %v448
        %v556 = vpop.f32.mrb[0].mxu0
        %v557 = vadd.f32 0.0, %v556
        %v558 = vpop.f32.mrb[0].mxu0
        %v559 = vpop.f32.mrb[0].mxu0
        %v560 = vadd.f32 0.0, %v559
        %v561 = vpop.f32.mrb[0].mxu0
        %562 = vmatprep.mubr.bf16.mxu0 0
        %563 = vmatmul.mubr.bf16.gmra.mrb[0].mxu0 %v451
        %v564 = vpop.f32.mrb[0].mxu0
        %v565 = vadd.f32 0.0, %v564
        %v566 = vpop.f32.mrb[0].mxu0
        %v567 = vpop.f32.mrb[0].mxu0
        %v568 = vadd.f32 0.0, %v567
        %v569 = vpop.f32.mrb[0].mxu0
        %570 = vmatprep.mubr.bf16.mxu0 0
        %571 = vmatmul.mubr.bf16.gmra.mrb[0].mxu0 %v454
        %v572 = vpop.f32.mrb[0].mxu0
        %v573 = vadd.f32 0.0, %v572
        %v574 = vpop.f32.mrb[0].mxu0
        %v575 = vpop.f32.mrb[0].mxu0
        %v576 = vadd.f32 0.0, %v575
        %v577 = vpop.f32.mrb[0].mxu0
        %578 = vmatprep.mubr.bf16.mxu0 0
        %579 = vmatmul.mubr.bf16.gmra.mrb[0].mxu0 %v457
        %v580 = vpop.f32.mrb[0].mxu0
        %v581 = vadd.f32 0.0, %v580
        %v582 = vpop.f32.mrb[0].mxu0
        %v583 = vpop.f32.mrb[0].mxu0
        %v584 = vadd.f32 0.0, %v583
        %v585 = vpop.f32.mrb[0].mxu0
        %586 = vmatprep.mubr.bf16.mxu0 0
        %587 = vmatmul.mubr.bf16.gmra.mrb[0].mxu0 %v460
        %v588 = vpop.f32.mrb[0].mxu0
        %v589 = vadd.f32 0.0, %v588
        %v590 = vpop.f32.mrb[0].mxu0
        %v591 = vpop.f32.mrb[0].mxu0
        %v592 = vadd.f32 0.0, %v591
        %v593 = vpop.f32.mrb[0].mxu0
        %594 = vmatprep.mubr.bf16.mxu0 0
        %595 = vmatmul.mubr.bf16.gmra.mrb[0].mxu0 %v463
        %v596 = vpop.f32.mrb[0].mxu0
        %v597 = vadd.f32 0.0, %v596
        %v598 = vpop.f32.mrb[0].mxu0
        %v599 = vpop.f32.mrb[0].mxu0
        %v600 = vadd.f32 0.0, %v599
        %v601 = vpop.f32.mrb[0].mxu0
        %602 = vmatprep.mubr.bf16.mxu0 0
        %603 = vmatmul.mubr.bf16.gmra.mrb[0].mxu0 %v466
        %v604 = vpop.f32.mrb[0].mxu0
        %v605 = vadd.f32 0.0, %v604
        %v606 = vpop.f32.mrb[0].mxu0
        %v607 = vpop.f32.mrb[0].mxu0
        %v608 = vadd.f32 0.0, %v607
        %v609 = vpop.f32.mrb[0].mxu0
        %610 = vmatprep.mubr.bf16.mxu0 0
        %611 = vmatmul.mubr.bf16.gmra.mrb[0].mxu0 %v469
        %v612 = vpop.f32.mrb[0].mxu0
        %v613 = vadd.f32 0.0, %v612
        %v614 = vpop.f32.mrb[0].mxu0
        %v615 = vpop.f32.mrb[0].mxu0
        %v616 = vadd.f32 0.0, %v615
        %v617 = vpop.f32.mrb[0].mxu0
        %618 = vmatprep.mubr.bf16.mxu0 0
        %619 = vmatmul.mubr.bf16.gmra.mrb[0].mxu0 %v472
        %v620 = vpop.f32.mrb[0].mxu0
        %v621 = vadd.f32 0.0, %v620
        %v622 = vpop.f32.mrb[0].mxu0
        %v623 = vpop.f32.mrb[0].mxu0
        %v624 = vadd.f32 0.0, %v623
        %v625 = vpop.f32.mrb[0].mxu0
        %626 = vmatprep.mubr.bf16.mxu0 0
        %627 = vmatmul.mubr.bf16.gmra.mrb[0].mxu0 %v475
        %v628 = vpop.f32.mrb[0].mxu0
        %v629 = vadd.f32 0.0, %v628
        %v630 = vpop.f32.mrb[0].mxu0
        %v631 = vpop.f32.mrb[0].mxu0
        %v632 = vadd.f32 0.0, %v631
        %v633 = vpop.f32.mrb[0].mxu0
        %634 = vmatprep.mubr.bf16.mxu0 0
        %635 = vmatmul.mubr.bf16.gmra.mrb[0].mxu0 %v478
        %v636 = vpop.f32.mrb[0].mxu0
        %v637 = vadd.f32 0.0, %v636
        %v638 = vpop.f32.mrb[0].mxu0
        %v639 = vpop.f32.mrb[0].mxu0
        %v640 = vadd.f32 0.0, %v639
        %v641 = vpop.f32.mrb[0].mxu0
        %642 = vmatprep.mubr.bf16.mxu0 0
        %643 = vmatmul.mubr.bf16.gmra.mrb[0].mxu0 %v481
        %v644 = vpop.f32.mrb[0].mxu0
        %v645 = vadd.f32 0.0, %v644
        %v646 = vpop.f32.mrb[0].mxu0
        %v647 = vpop.f32.mrb[0].mxu0
        %v648 = vadd.f32 0.0, %v647
        %v649 = vpop.f32.mrb[0].mxu0
        %650 = vmatprep.mubr.bf16.mxu0 0
        %651 = vmatmul.mubr.bf16.gmra.mrb[0].mxu0 %v484
        %v652 = vpop.f32.mrb[0].mxu0
        %v653 = vadd.f32 0.0, %v652
        %v654 = vpop.f32.mrb[0].mxu0
        %v655 = vpop.f32.mrb[0].mxu0
        %v656 = vadd.f32 0.0, %v655
        %v657 = vpop.f32.mrb[0].mxu0
        %658 = vmatprep.mubr.bf16.mxu0 0
        %659 = vmatmul.mubr.bf16.gmra.mrb[0].mxu0 %v487
        %v660 = vpop.f32.mrb[0].mxu0
        %v661 = vadd.f32 0.0, %v660
        %v662 = vpop.f32.mrb[0].mxu0
        %v663 = vpop.f32.mrb[0].mxu0
        %v664 = vadd.f32 0.0, %v663
        %v665 = vpop.f32.mrb[0].mxu0
        %666 = vmatprep.mubr.bf16.mxu0 0
        %667 = vmatmul.mubr.bf16.gmra.mrb[0].mxu0 %v490
        %v668 = vpop.f32.mrb[0].mxu0
        %v669 = vadd.f32 0.0, %v668
        %v670 = vpop.f32.mrb[0].mxu0
        %v671 = vpop.f32.mrb[0].mxu0
        %v672 = vadd.f32 0.0, %v671
        %v673 = vpop.f32.mrb[0].mxu0
        %674 = vmatprep.mubr.bf16.mxu0 0
        %675 = vmatmul.mubr.bf16.gmra.mrb[0].mxu0 %v493
        %v676 = vpop.f32.mrb[0].mxu0
        %v677 = vadd.f32 0.0, %v676
        %v678 = vpop.f32.mrb[0].mxu0
        %v679 = vpop.f32.mrb[0].mxu0
        %v680 = vadd.f32 0.0, %v679
        %v681 = vpop.f32.mrb[0].mxu0
        %682 = vmatprep.mubr.bf16.mxu0 0
        %683 = vmatmul.mubr.bf16.gmra.mrb[0].mxu0 %v496
        %v684 = vpop.f32.mrb[0].mxu0
        %v685 = vadd.f32 0.0, %v684
        %v686 = vpop.f32.mrb[0].mxu0
        %v687 = vpop.f32.mrb[0].mxu0
        %v688 = vadd.f32 0.0, %v687
        %v689 = vpop.f32.mrb[0].mxu0
        %690 = vdwg.mxu0
        %v691 = vpack.c.bf16 %v536, %v533
        %v692 = vpack.c.bf16 %v544, %v541
        %v693 = vpack.c.bf16 %v552, %v549
        %v694 = vpack.c.bf16 %v560, %v557
        %v698 = vunpack.c.l.b16 %v239
        %v699 = vunpack.c.l.b16 %v240
        %v700 = vunpack.c.l.b16 %v241
        %v701 = vpack.c.b16 %v699, %v698
        %v702 = vpack.c.b16 %v700, %v700
        %vm703 = vcmask 523264
        %v705 = vsel %vm703, %v701, 0
        %v708 = vsel %vm703, %v702, 0
        %710 = vmatprep.subr.bf16.mxu0 0
        %711 = vmatpush1.bf16.msra.mxu0 %v691
        %712 = vmatprep.subr.bf16.mxu0 0
        %713 = vmatpush1.bf16.msra.mxu0 %v692
        %714 = vmatprep.subr.bf16.mxu0 0
        %715 = vmatpush1.bf16.msra.mxu0 %v693
        %716 = vmatprep.subr.bf16.mxu0 0
        %717 = vmatpush1.bf16.msra.mxu0 %v694
        %718 = vmatprep.subr.bf16.mxu0 0
        %719 = vmatpush1.bf16.msra.mxu0 0
        %720 = vmatprep.subr.bf16.mxu0 0
        %721 = vmatpush1.bf16.msra.mxu0 0
        %722 = vmatprep.subr.bf16.mxu0 0
        %723 = vmatpush1.bf16.msra.mxu0 0
        %724 = vmatprep.subr.bf16.mxu0 0
        %725 = vmatpush1.bf16.msra.mxu0 0
        %726 = vmatprep.subr.bf16.mxu0 0
        %727 = vmatpush1.bf16.msra.mxu0 0
        %728 = vmatprep.subr.bf16.mxu0 0
        %729 = vmatpush1.bf16.msra.mxu0 0
        %730 = vmatprep.subr.bf16.mxu0 0
        %731 = vmatpush1.bf16.msra.mxu0 0
        %732 = vmatprep.subr.bf16.mxu0 0
        %733 = vmatpush1.bf16.msra.mxu0 0
        %734 = vmatprep.subr.bf16.mxu0 0
        %735 = vmatpush1.bf16.msra.mxu0 0
        %736 = vmatprep.subr.bf16.mxu0 0
        %737 = vmatpush1.bf16.msra.mxu0 0
        %738 = vmatprep.subr.bf16.mxu0 0
        %739 = vmatpush1.bf16.msra.mxu0 0
        %740 = vmatprep.subr.bf16.mxu0 0
        %741 = vmatpush1.bf16.msra.mxu0 0
        %742 = vmatprep.mubr.bf16.mxu0 0
        %743 = vmatmul.mubr.bf16.gmra.mrb[0].mxu0 %v705
        %v744 = vpop.f32.mrb[0].mxu0
        %v745 = vadd.f32 0.0, %v744
        %v746 = vpop.f32.mrb[0].mxu0
        %v747 = vpop.f32.mrb[0].mxu0
        %v748 = vadd.f32 0.0, %v747
        %v749 = vpop.f32.mrb[0].mxu0
        %750 = vmatprep.mubr.bf16.mxu0 0
        %751 = vmatmul.mubr.bf16.gmra.mrb[0].mxu0 %v708
        %v752 = vpop.f32.mrb[0].mxu0
        %v753 = vadd.f32 0.0, %v752
        %v754 = vpop.f32.mrb[0].mxu0
        %v755 = vpop.f32.mrb[0].mxu0
        %v756 = vpop.f32.mrb[0].mxu0
        %757 = vdwg.mxu0
        %v758 = vpack.c.bf16 %v568, %v565
        %v759 = vpack.c.bf16 %v576, %v573
        %v760 = vpack.c.bf16 %v584, %v581
        %v761 = vpack.c.bf16 %v592, %v589
        %762 = vmatprep.subr.bf16.mxu0 0
        %763 = vmatpush1.bf16.msra.mxu0 %v758
        %764 = vmatprep.subr.bf16.mxu0 0
        %765 = vmatpush1.bf16.msra.mxu0 %v759
        %766 = vmatprep.subr.bf16.mxu0 0
        %767 = vmatpush1.bf16.msra.mxu0 %v760
        %768 = vmatprep.subr.bf16.mxu0 0
        %769 = vmatpush1.bf16.msra.mxu0 %v761
        %770 = vmatprep.subr.bf16.mxu0 0
        %771 = vmatpush1.bf16.msra.mxu0 0
        %772 = vmatprep.subr.bf16.mxu0 0
        %773 = vmatpush1.bf16.msra.mxu0 0
        %774 = vmatprep.subr.bf16.mxu0 0
        %775 = vmatpush1.bf16.msra.mxu0 0
        %776 = vmatprep.subr.bf16.mxu0 0
        %777 = vmatpush1.bf16.msra.mxu0 0
        %778 = vmatprep.subr.bf16.mxu0 0
        %779 = vmatpush1.bf16.msra.mxu0 0
        %780 = vmatprep.subr.bf16.mxu0 0
        %781 = vmatpush1.bf16.msra.mxu0 0
        %782 = vmatprep.subr.bf16.mxu0 0
        %783 = vmatpush1.bf16.msra.mxu0 0
        %784 = vmatprep.subr.bf16.mxu0 0
        %785 = vmatpush1.bf16.msra.mxu0 0
        %786 = vmatprep.subr.bf16.mxu0 0
        %787 = vmatpush1.bf16.msra.mxu0 0
        %788 = vmatprep.subr.bf16.mxu0 0
        %789 = vmatpush1.bf16.msra.mxu0 0
        %790 = vmatprep.subr.bf16.mxu0 0
        %791 = vmatpush1.bf16.msra.mxu0 0
        %792 = vmatprep.subr.bf16.mxu0 0
        %793 = vmatpush1.bf16.msra.mxu0 0
        %794 = vmatprep.mubr.bf16.mxu0 0
        %795 = vmatmul.mubr.bf16.gmra.mrb[0].mxu0 %v705
        %v796 = vpop.f32.mrb[0].mxu0
        %v797 = vadd.f32 0.0, %v796
        %v798 = vpop.f32.mrb[0].mxu0
        %v799 = vpop.f32.mrb[0].mxu0
        %v800 = vadd.f32 0.0, %v799
        %v801 = vpop.f32.mrb[0].mxu0
        %802 = vmatprep.mubr.bf16.mxu0 0
        %803 = vmatmul.mubr.bf16.gmra.mrb[0].mxu0 %v708
        %v804 = vpop.f32.mrb[0].mxu0
        %v805 = vadd.f32 0.0, %v804
        %v806 = vpop.f32.mrb[0].mxu0
        %v807 = vpop.f32.mrb[0].mxu0
        %v808 = vpop.f32.mrb[0].mxu0
        %809 = vdwg.mxu0
        %v810 = vpack.c.bf16 %v600, %v597
        %v811 = vpack.c.bf16 %v608, %v605
        %v812 = vpack.c.bf16 %v616, %v613
        %v813 = vpack.c.bf16 %v624, %v621
        %814 = vmatprep.subr.bf16.mxu0 0
        %815 = vmatpush1.bf16.msra.mxu0 %v810
        %816 = vmatprep.subr.bf16.mxu0 0
        %817 = vmatpush1.bf16.msra.mxu0 %v811
        %818 = vmatprep.subr.bf16.mxu0 0
        %819 = vmatpush1.bf16.msra.mxu0 %v812
        %820 = vmatprep.subr.bf16.mxu0 0
        %821 = vmatpush1.bf16.msra.mxu0 %v813
        %822 = vmatprep.subr.bf16.mxu0 0
        %823 = vmatpush1.bf16.msra.mxu0 0
        %824 = vmatprep.subr.bf16.mxu0 0
        %825 = vmatpush1.bf16.msra.mxu0 0
        %826 = vmatprep.subr.bf16.mxu0 0
        %827 = vmatpush1.bf16.msra.mxu0 0
        %828 = vmatprep.subr.bf16.mxu0 0
        %829 = vmatpush1.bf16.msra.mxu0 0
        %830 = vmatprep.subr.bf16.mxu0 0
        %831 = vmatpush1.bf16.msra.mxu0 0
        %832 = vmatprep.subr.bf16.mxu0 0
        %833 = vmatpush1.bf16.msra.mxu0 0
        %834 = vmatprep.subr.bf16.mxu0 0
        %835 = vmatpush1.bf16.msra.mxu0 0
        %836 = vmatprep.subr.bf16.mxu0 0
        %837 = vmatpush1.bf16.msra.mxu0 0
        %838 = vmatprep.subr.bf16.mxu0 0
        %839 = vmatpush1.bf16.msra.mxu0 0
        %840 = vmatprep.subr.bf16.mxu0 0
        %841 = vmatpush1.bf16.msra.mxu0 0
        %842 = vmatprep.subr.bf16.mxu0 0
        %843 = vmatpush1.bf16.msra.mxu0 0
        %844 = vmatprep.subr.bf16.mxu0 0
        %845 = vmatpush1.bf16.msra.mxu0 0
        %846 = vmatprep.mubr.bf16.mxu0 0
        %847 = vmatmul.mubr.bf16.gmra.mrb[0].mxu0 %v705
        %v848 = vpop.f32.mrb[0].mxu0
        %v849 = vadd.f32 0.0, %v848
        %v850 = vpop.f32.mrb[0].mxu0
        %v851 = vpop.f32.mrb[0].mxu0
        %v852 = vadd.f32 0.0, %v851
        %v853 = vpop.f32.mrb[0].mxu0
        %854 = vmatprep.mubr.bf16.mxu0 0
        %855 = vmatmul.mubr.bf16.gmra.mrb[0].mxu0 %v708
        %v856 = vpop.f32.mrb[0].mxu0
        %v857 = vadd.f32 0.0, %v856
        %v858 = vpop.f32.mrb[0].mxu0
        %v859 = vpop.f32.mrb[0].mxu0
        %v860 = vpop.f32.mrb[0].mxu0
        %861 = vdwg.mxu0
        %v862 = vpack.c.bf16 %v632, %v629
        %v863 = vpack.c.bf16 %v640, %v637
        %v864 = vpack.c.bf16 %v648, %v645
        %v865 = vpack.c.bf16 %v656, %v653
        %866 = vmatprep.subr.bf16.mxu0 0
        %867 = vmatpush1.bf16.msra.mxu0 %v862
        %868 = vmatprep.subr.bf16.mxu0 0
        %869 = vmatpush1.bf16.msra.mxu0 %v863
        %870 = vmatprep.subr.bf16.mxu0 0
        %871 = vmatpush1.bf16.msra.mxu0 %v864
        %872 = vmatprep.subr.bf16.mxu0 0
        %873 = vmatpush1.bf16.msra.mxu0 %v865
        %874 = vmatprep.subr.bf16.mxu0 0
        %875 = vmatpush1.bf16.msra.mxu0 0
        %876 = vmatprep.subr.bf16.mxu0 0
        %877 = vmatpush1.bf16.msra.mxu0 0
        %878 = vmatprep.subr.bf16.mxu0 0
        %879 = vmatpush1.bf16.msra.mxu0 0
        %880 = vmatprep.subr.bf16.mxu0 0
        %881 = vmatpush1.bf16.msra.mxu0 0
        %882 = vmatprep.subr.bf16.mxu0 0
        %883 = vmatpush1.bf16.msra.mxu0 0
        %884 = vmatprep.subr.bf16.mxu0 0
        %885 = vmatpush1.bf16.msra.mxu0 0
        %886 = vmatprep.subr.bf16.mxu0 0
        %887 = vmatpush1.bf16.msra.mxu0 0
        %888 = vmatprep.subr.bf16.mxu0 0
        %889 = vmatpush1.bf16.msra.mxu0 0
        %890 = vmatprep.subr.bf16.mxu0 0
        %891 = vmatpush1.bf16.msra.mxu0 0
        %892 = vmatprep.subr.bf16.mxu0 0
        %893 = vmatpush1.bf16.msra.mxu0 0
        %894 = vmatprep.subr.bf16.mxu0 0
        %895 = vmatpush1.bf16.msra.mxu0 0
        %896 = vmatprep.subr.bf16.mxu0 0
        %897 = vmatpush1.bf16.msra.mxu0 0
        %898 = vmatprep.mubr.bf16.mxu0 0
        %899 = vmatmul.mubr.bf16.gmra.mrb[0].mxu0 %v705
        %v900 = vpop.f32.mrb[0].mxu0
        %v901 = vadd.f32 0.0, %v900
        %v902 = vpop.f32.mrb[0].mxu0
        %v903 = vpop.f32.mrb[0].mxu0
        %v904 = vadd.f32 0.0, %v903
        %v905 = vpop.f32.mrb[0].mxu0
        %906 = vmatprep.mubr.bf16.mxu0 0
        %907 = vmatmul.mubr.bf16.gmra.mrb[0].mxu0 %v708
        %v908 = vpop.f32.mrb[0].mxu0
        %v909 = vadd.f32 0.0, %v908
        %v910 = vpop.f32.mrb[0].mxu0
        %v911 = vpop.f32.mrb[0].mxu0
        %v912 = vpop.f32.mrb[0].mxu0
        %913 = vdwg.mxu0
        %v914 = vpack.c.bf16 %v664, %v661
        %v915 = vpack.c.bf16 %v672, %v669
        %v916 = vpack.c.bf16 %v680, %v677
        %v917 = vpack.c.bf16 %v688, %v685
        %918 = vmatprep.subr.bf16.mxu0 0
        %919 = vmatpush1.bf16.msra.mxu0 %v914
        %920 = vmatprep.subr.bf16.mxu0 0
        %921 = vmatpush1.bf16.msra.mxu0 %v915
        %922 = vmatprep.subr.bf16.mxu0 0
        %923 = vmatpush1.bf16.msra.mxu0 %v916
        %924 = vmatprep.subr.bf16.mxu0 0
        %925 = vmatpush1.bf16.msra.mxu0 %v917
        %926 = vmatprep.subr.bf16.mxu0 0
        %927 = vmatpush1.bf16.msra.mxu0 0
        %928 = vmatprep.subr.bf16.mxu0 0
        %929 = vmatpush1.bf16.msra.mxu0 0
        %930 = vmatprep.subr.bf16.mxu0 0
        %931 = vmatpush1.bf16.msra.mxu0 0
        %932 = vmatprep.subr.bf16.mxu0 0
        %933 = vmatpush1.bf16.msra.mxu0 0
        %934 = vmatprep.subr.bf16.mxu0 0
        %935 = vmatpush1.bf16.msra.mxu0 0
        %936 = vmatprep.subr.bf16.mxu0 0
        %937 = vmatpush1.bf16.msra.mxu0 0
        %938 = vmatprep.subr.bf16.mxu0 0
        %939 = vmatpush1.bf16.msra.mxu0 0
        %940 = vmatprep.subr.bf16.mxu0 0
        %941 = vmatpush1.bf16.msra.mxu0 0
        %942 = vmatprep.subr.bf16.mxu0 0
        %943 = vmatpush1.bf16.msra.mxu0 0
        %944 = vmatprep.subr.bf16.mxu0 0
        %945 = vmatpush1.bf16.msra.mxu0 0
        %946 = vmatprep.subr.bf16.mxu0 0
        %947 = vmatpush1.bf16.msra.mxu0 0
        %948 = vmatprep.subr.bf16.mxu0 0
        %949 = vmatpush1.bf16.msra.mxu0 0
        %950 = vmatprep.mubr.bf16.mxu0 0
        %951 = vmatmul.mubr.bf16.gmra.mrb[0].mxu0 %v705
        %v952 = vpop.f32.mrb[0].mxu0
        %v953 = vadd.f32 0.0, %v952
        %v954 = vpop.f32.mrb[0].mxu0
        %v955 = vpop.f32.mrb[0].mxu0
        %v956 = vadd.f32 0.0, %v955
        %v957 = vpop.f32.mrb[0].mxu0
        %958 = vmatprep.mubr.bf16.mxu0 0
        %959 = vmatmul.mubr.bf16.gmra.mrb[0].mxu0 %v708
        %v960 = vpop.f32.mrb[0].mxu0
        %v961 = vadd.f32 0.0, %v960
        %v962 = vpop.f32.mrb[0].mxu0
        %v963 = vpop.f32.mrb[0].mxu0
        %v964 = vpop.f32.mrb[0].mxu0
        %965 = vdwg.mxu0
        %v966 = vadd.f32 %v745, %v333
        %v967 = vadd.f32 %v748, %v333
        %v968 = vadd.f32 %v753, %v333
        %v969 = vadd.f32 %v797, %v371
        %v970 = vadd.f32 %v800, %v371
        %v971 = vadd.f32 %v805, %v371
        %v972 = vmul.f32 %v966, %v966
        %v973 = vmul.f32 %v967, %v967
        %v974 = vmul.f32 %v968, %v968
        %v975 = vmul.f32 %v969, %v969
        %v976 = vmul.f32 %v970, %v970
        %v977 = vmul.f32 %v971, %v971
        %v978 = vmul.f32 %v966, %v969
        %v979 = vmul.f32 %v967, %v970
        %v980 = vmul.f32 %v968, %v971
        %v981 = vmul.f32 %v745, %v745
        %v982 = vmul.f32 %v748, %v748
        %v983 = vmul.f32 %v753, %v753
        %v984 = vsub.f32 %v849, %v981
        %v985 = vsub.f32 %v852, %v982
        %v986 = vsub.f32 %v857, %v983
        %v987 = vmax.f32 %v984, 0.0
        %v988 = vmax.f32 %v985, 0.0
        %v989 = vmax.f32 %v986, 0.0
        %v990 = vmul.f32 %v797, %v797
        %v991 = vmul.f32 %v800, %v800
        %v992 = vmul.f32 %v805, %v805
        %v993 = vsub.f32 %v901, %v990
        %v994 = vsub.f32 %v904, %v991
        %v995 = vsub.f32 %v909, %v992
        %v996 = vmax.f32 %v993, 0.0
        %v997 = vmax.f32 %v994, 0.0
        %v998 = vmax.f32 %v995, 0.0
        %v999 = vmul.f32 %v745, %v797
        %v1000 = vmul.f32 %v748, %v800
        %v1001 = vmul.f32 %v753, %v805
        %v1002 = vsub.f32 %v953, %v999
        %v1003 = vsub.f32 %v956, %v1000
        %v1004 = vsub.f32 %v961, %v1001
        %v1005 = vmul.f32 %v978, 2.0
        %v1006 = vmul.f32 %v979, 2.0
        %v1007 = vmul.f32 %v980, 2.0
        %v1008 = vadd.f32 %v1005, 0.0001
        %v1009 = vadd.f32 %v1006, 0.0001
        %v1010 = vadd.f32 %v1007, 0.0001
        %v1011 = vmul.f32 %v1002, 2.0
        %v1012 = vmul.f32 %v1003, 2.0
        %v1013 = vmul.f32 %v1004, 2.0
        %v1014 = vadd.f32 %v1011, 0.0009
        %v1015 = vadd.f32 %v1012, 0.0009
        %v1016 = vadd.f32 %v1013, 0.0009
        %v1017 = vmul.f32 %v1008, %v1014
        %v1018 = vmul.f32 %v1009, %v1015
        %v1019 = vmul.f32 %v1010, %v1016
        %v1020 = vadd.f32 %v972, %v975
        %v1021 = vadd.f32 %v973, %v976
        %v1022 = vadd.f32 %v974, %v977
        %v1023 = vadd.f32 %v1020, 0.0001
        %v1024 = vadd.f32 %v1021, 0.0001
        %v1025 = vadd.f32 %v1022, 0.0001
        %v1026 = vadd.f32 %v987, %v996
        %v1027 = vadd.f32 %v988, %v997
        %v1028 = vadd.f32 %v989, %v998
        %v1029 = vadd.f32 %v1026, 0.0009
        %v1030 = vadd.f32 %v1027, 0.0009
        %v1031 = vadd.f32 %v1028, 0.0009
        %v1032 = vmul.f32 %v1023, %v1029
        %v1033 = vmul.f32 %v1024, %v1030
        %v1034 = vmul.f32 %v1025, %v1031
        %v1035 = vlaneseq
        %v1036 = vand.u32 %v1035, 127
        %vm1037 = vcmp.lt.s32.totalorder %v1036, 6
        %v1038 = vrcp.pop %v1032
        %v1039 = vrcp.pop %v1033
        %v1040 = vrcp.pop %v1034
        %v1041 = vmul.f32 %v1017, %v1038
        %v1042 = vmul.f32 %v1018, %v1039
        %v1043 = vmul.f32 %v1019, %v1040
        %v1044 = vsel %vm1037, %v1041, 0.0
        %v1045 = vsel %vm1037, %v1042, 0.0
        %v1046 = vsel %vm1037, %v1043, 0.0
        %1047 = vadd.xlane.f32.xlu0 %v1044
        %v1048 = vpop.xlane.xlu0 %1047
        %1049 = vadd.xlane.f32.xlu0 %v1045
        %v1050 = vpop.xlane.xlu0 %1049
        %1051 = vadd.xlane.f32.xlu0 %v1046
        %v1052 = vpop.xlane.xlu0 %1051
        %v1053 = vadd.f32 %v1048, %v1050
        %v1054 = vadd.f32 %v1053, %v1052
        %v1055 = vrot.slane %v1054, 4
        %v1056 = vadd.f32 %v1054, %v1055
        %v1057 = vrot.slane %v1056, 2
        %v1058 = vadd.f32 %v1056, %v1057
        %v1059 = vrot.slane %v1058, 1
        %v1060 = vadd.f32 %v1058, %v1059
        %v1061 = vlaneseq
        %v1062 = vshrl.u32 %v1061, 7
        %vm1063 = vcmp.eq.s32.totalorder %v1062, 0
        %vm1064 = vcmp.eq.s32.totalorder %v1036, 0
        %vm1065 = vmand %vm1063, %vm1064
        %v1066 = vsel %vm1065, %v295, 0.0
        %vm1067 = vcmp.eq.s32.totalorder %v1036, 1
        %vm1068 = vmand %vm1063, %vm1067
        %v1069 = vsel %vm1068, %v1060, 0.0
        %v1070 = vadd.f32 %v1066, %v1069
        %1071 = vst [vmem:[%s207] sm:$0xff] %v1070
        %s1072 = sand.u32 %s120, 1
        %s1073 = scalar_lea.sflag [#allocation3], %s1072
        %s1074 = sand.u32 %s120, 1
        %s1075 = smul.addr %s1074, 8
        %s1076 = scalar_lea.vmem [#allocation2], %s1075
        // Predicated region
        $region37: #{tpu_custom_call.1} parent=35 // pred_check
          %p1077 = pneg %p130
        $region38: #{tpu_custom_call.1} parent=35 // pred_check_branch
          %1079 = sbr.rel (%p1077) target = $region40
        $region39: #{tpu_custom_call.1} parent=35 // pred_region
          %s1081 = ssub.s32 128, 128
          %1082 = vsyncadd %s1073, %s1081
          %s1083 = smul.addr %s18, 128
          %s1084 = scalar_lea.hbm %s4, %s1083
          %s1086 = sshll.u32 %s1076, 4
          %s1087 = int_to_ptr.vmem [resolvable:$true] %s1086
          %1089 = dma.vmem_to_hbm [thread:$0]  %s1087, 128, %s1084, %s1073
        $region40: #{tpu_custom_call.1} parent=35 // pred_fallthru
          _
      $region36: #{tpu_custom_call.1} parent=5 // pred_fallthru
        _
      %p1090 = scmp.le.s32.totalorder 2, %s13
      // Predicated region
      $region41: #{tpu_custom_call.1} parent=5 // pred_check
        %p1091 = pneg %p1090
      $region42: #{tpu_custom_call.1} parent=5 // pred_check_branch
        %1093 = sbr.rel (%p1091) target = $region44
      $region43: #{tpu_custom_call.1} parent=5 // pred_region
        %s1094 = ssub.s32 %s13, 2
        // Predicated region
        $region45: #{tpu_custom_call.1} parent=43 // pred_check
          %p1095 = pneg %p136
        $region46: #{tpu_custom_call.1} parent=43 // pred_check_branch
          %1097 = sbr.rel (%p1095) target = $region48
        $region47: #{tpu_custom_call.1} parent=43 // pred_region
          %s1098 = sand.u32 %s121, 1
          %s1099 = scalar_lea.sflag [#allocation3], %s1098
          %s1100 = sand.u32 %s121, 1
          %s1101 = smul.addr %s1100, 8
          %s1102 = scalar_lea.vmem [#allocation2], %s1101
          %1103 = dma.done %s1099, 128
        $region48: #{tpu_custom_call.1} parent=43 // pred_fallthru
          _
      $region44: #{tpu_custom_call.1} parent=5 // pred_fallthru
        _
    $region6: #{tpu_custom_call.1} parent=1 // loop_footer
      %s17 = sadd.s32 1, %s13
    $region7: #{tpu_custom_call.1} parent=1 // loop_footer_branch
      %12 = sbr.rel target = $region3
    $region8: #{tpu_custom_call.1} parent=1 // loop_exit
      _
    %1104 = vsyncpa [#allocation3], 1
    %s1105 = scalar_lea.sflag [#allocation3], 1
    %1106 = vsyncpa %s1105, 1

</llo_original>
